<compile_context>
chip_gen: v7x
topology: tpu7x:2x2x1
jax: 0.10.0
libtpu: 0.0.40
codegen_flags: <defaults>
</compile_context>

<pallas_src>
import functools

import numpy as np
import jax
import jax.numpy as jnp
from jax import lax
from jax.experimental import pallas as pl
from jax.experimental.pallas import tpu as pltpu

# ----------------------------- small config ---------------------------------
N_HEAD = 2
MB = 2
BH = N_HEAD * MB          # bmm batch dimension (n_head * batch), as in the ref usage
LEN_Q = 8
LEN_K = 8
D_K = 32
D_V = 32
D_MODEL = 32              # temperature = d_model ** 0.5
NEG_BIG = -1e30           # finite stand-in for -inf in the additive mask


# ------------------------------ kernel body ----------------------------------
def sdpa_kernel(q_ref, k_ref, v_ref, mask_ref, out_ref, attn_ref,
                *, inv_temperature, bh, lq, lk):
    """Whole problem lives in one VMEM-resident block (gridless call).

    q_ref:    (bh*lq, dk)    bf16
    k_ref:    (bh*lk, dk)    bf16
    v_ref:    (bh*lk, dv)    bf16
    mask_ref: (bh*lq, lk)    f32 additive user mask (0 = keep, NEG_BIG = masked)
    out_ref:  (bh*lq, dv)    f32
    attn_ref: (bh*lq, bh*lk) f32  flattened block-diagonal attention tile
    """
    rows, cols = bh * lq, bh * lk

    q = q_ref[...]
    k = k_ref[...]
    v = v_ref[...]
    m_add = mask_ref[...]

    # --- scores: ONE dense MXU GEMM covering every (batch*head) at once ------
    scores = jnp.einsum('rd,cd->rc', q, k,
                        preferred_element_type=jnp.float32) * inv_temperature

    # --- additive masks, built in-register (no extra HBM traffic) ------------
    r_idx = lax.broadcasted_iota(jnp.int32, (rows, cols), 0)
    c_idx = lax.broadcasted_iota(jnp.int32, (rows, cols), 1)
    j_idx = lax.broadcasted_iota(jnp.int32, (lk, cols), 0)
    e_idx = lax.broadcasted_iota(jnp.int32, (lk, cols), 1)
    same_block = jnp.zeros((rows, cols), jnp.bool_)
    expander = jnp.zeros((lk, cols), jnp.float32)
    for b in range(bh):   # static unroll; bh is a small compile-time constant
        same_block = same_block | (
            (r_idx >= b * lq) & (r_idx < (b + 1) * lq) &
            (c_idx >= b * lk) & (c_idx < (b + 1) * lk))
        expander = expander + (e_idx == j_idx + b * lk).astype(jnp.float32)

    # Block-diagonal structural mask: kill cross-(batch*head) score pairs.
    struct_add = jnp.where(same_block, 0.0, NEG_BIG)
    # Broadcast the compact (rows, lk) user mask across the lk-wide key blocks
    # with one tiny MXU matmul (expander[j, c] == 1 iff c % lk == j).
    user_add = jnp.einsum('rj,jc->rc', m_add, expander,
                          preferred_element_type=jnp.float32)

    logits = scores + struct_add + user_add

    # --- row softmax over the (flattened) key axis, all in f32 ---------------
    # TODO(synk): reference calls F.softmax(attn) with the legacy implicit dim;
    # we implement the intended attention semantics: softmax over the key axis.
    m = jnp.max(logits, axis=-1, keepdims=True)
    p = jnp.exp(logits - m)
    attn = p / jnp.sum(p, axis=-1, keepdims=True)   # exact normalization

    # TODO(synk): attn_dropout is identity at inference; not implemented.
    attn_ref[...] = attn

    # --- output: ONE dense MXU GEMM (off-diagonal attn is exactly 0) ---------
    out_ref[...] = jnp.einsum('rc,cd->rd', attn.astype(v.dtype), v,
                              preferred_element_type=jnp.float32)


# ------------------------------ pallas wrapper --------------------------------
def scaled_dot_product_attention(q, k, v, attn_mask=None, *, d_model=D_MODEL):
    """q: (BH, Lq, Dk), k: (BH, Lk, Dk), v: (BH, Lk, Dv),
       attn_mask: optional (BH, Lq, Lk) bool/0-1 (True/1 = masked).
       Returns (output (BH, Lq, Dv) f32, attn (BH, Lq, Lk) f32)."""
    bh, lq, dk = q.shape
    _, lk, dv = v.shape
    rows, cols = bh * lq, bh * lk

    # Flatten (batch*head, seq) into MXU-friendly 2-D tiles; bf16 operands for
    # single-pass MXU issue (accumulation / softmax math stays f32 in-kernel).
    q2 = q.reshape(rows, dk).astype(jnp.bfloat16)
    k2 = k.reshape(cols, dk).astype(jnp.bfloat16)
    v2 = v.reshape(cols, dv).astype(jnp.bfloat16)

    # Compact additive user mask in (BH*Lq, Lk) layout: 0 = keep, NEG_BIG = masked.
    if attn_mask is None:
        m_add = jnp.zeros((rows, lk), jnp.float32)
    else:
        assert attn_mask.shape == (bh, lq, lk), (
            f"Attention mask shape {attn_mask.shape} mismatch with logits "
            f"shape {(bh, lq, lk)}.")
        m_add = jnp.where(attn_mask.reshape(rows, lk).astype(bool),
                          NEG_BIG, 0.0).astype(jnp.float32)

    kern = functools.partial(
        sdpa_kernel,
        inv_temperature=1.0 / (float(d_model) ** 0.5),
        bh=bh, lq=lq, lk=lk)

    vmem = pl.BlockSpec(memory_space=pltpu.VMEM)   # full-array VMEM block, no grid
    out_flat, attn_flat = pl.pallas_call(
        kern,
        out_shape=[
            jax.ShapeDtypeStruct((rows, dv), jnp.float32),    # flattened output
            jax.ShapeDtypeStruct((rows, cols), jnp.float32),  # flattened attn tile
        ],
        in_specs=[vmem, vmem, vmem, vmem],
        out_specs=[vmem, vmem],
    )(q2, k2, v2, m_add)

    out = out_flat.reshape(bh, lq, dv)
    # Extract the per-(batch*head) diagonal blocks of the flattened attn tile.
    attn = attn_flat.reshape(bh, lq, bh, lk)[jnp.arange(bh), :, jnp.arange(bh), :]
    return out, attn


# --------------------------- pure-JAX reference -------------------------------
def _reference(q, k, v, attn_mask, d_model):
    """Reference mirroring the kernel's dtype strategy: bf16 matmul operands,
    f32 accumulation & softmax, finite NEG_BIG mask (instead of -inf)."""
    qb, kb, vb = (x.astype(jnp.bfloat16) for x in (q, k, v))
    logits = jnp.einsum('bqd,bkd->bqk', qb, kb,
                        preferred_element_type=jnp.float32) / (float(d_model) ** 0.5)
    if attn_mask is not None:
        logits = jnp.where(attn_mask, NEG_BIG, logits)
    attn = jax.nn.softmax(logits, axis=-1)
    out = jnp.einsum('bqk,bkd->bqd', attn.astype(jnp.bfloat16), vb,
                     preferred_element_type=jnp.float32)
    return out, attn


# ----------------------------------- main -------------------------------------
if __name__ == "__main__":
    key = jax.random.PRNGKey(0)
    kq, kk, kv = jax.random.split(key, 3)

    q = jax.random.normal(kq, (BH, LEN_Q, D_K), jnp.float32)
    k = jax.random.normal(kk, (BH, LEN_K, D_K), jnp.float32)
    v = jax.random.normal(kv, (BH, LEN_K, D_V), jnp.float32)

    # Padding-style mask: mask out the last key position for batch item 1
    # (replicated over heads), as an (n_head*mb, len_q, len_k) boolean mask.
    key_pad = jnp.zeros((MB, LEN_K), dtype=bool).at[1, LEN_K - 1].set(True)
    key_pad = jnp.tile(key_pad, (N_HEAD, 1))                      # (BH, Lk)
    attn_mask = jnp.broadcast_to(key_pad[:, None, :], (BH, LEN_Q, LEN_K))

    out, attn = scaled_dot_product_attention(q, k, v, attn_mask, d_model=D_MODEL)
    jax.block_until_ready(out)
    jax.block_until_ready(attn)

    assert out.shape == (BH, LEN_Q, D_V)
    assert attn.shape == (BH, LEN_Q, LEN_K)
    assert bool(jnp.all(jnp.isfinite(out)))
    assert bool(jnp.all(jnp.isfinite(attn)))
    # Masked key positions must get (exactly) zero attention weight.
    assert float(jnp.max(jnp.where(attn_mask, attn, 0.0))) < 1e-6

    # Correctness vs. a pure-JAX reference using the same dtype strategy.
    ref_out, ref_attn = _reference(q, k, v, attn_mask, D_MODEL)
    np.testing.assert_allclose(np.asarray(attn), np.asarray(ref_attn),
                               rtol=1e-3, atol=1e-5)
    np.testing.assert_allclose(np.asarray(out), np.asarray(ref_out),
                               rtol=1e-2, atol=1e-2)

    print("KERNEL_OK")
</pallas_src>

<mosaic_0001>
module attributes {stable_mosaic.version = 11 : i64} {
  func.func @sdpa_kernel(%arg0: memref<32x32xbf16, #tpu.memory_space<vmem>>, %arg1: memref<32x32xbf16, #tpu.memory_space<vmem>>, %arg2: memref<32x32xbf16, #tpu.memory_space<vmem>>, %arg3: memref<32x8xf32, #tpu.memory_space<vmem>>, %arg4: memref<32x32xf32, #tpu.memory_space<vmem>>, %arg5: memref<32x32xf32, #tpu.memory_space<vmem>>) attributes {dimension_semantics = [], scalar_prefetch = 0 : i64, scratch_operands = 0 : i64, tpu.core_type = #tpu.core_type<tc>} {
    %c0 = arith.constant 0 : index
    %c0_0 = arith.constant 0 : index
    %0 = vector.load %arg0[%c0, %c0_0] : memref<32x32xbf16, #tpu.memory_space<vmem>>, vector<32x32xbf16>
    %c0_1 = arith.constant 0 : index
    %c0_2 = arith.constant 0 : index
    %1 = vector.load %arg1[%c0_1, %c0_2] : memref<32x32xbf16, #tpu.memory_space<vmem>>, vector<32x32xbf16>
    %c0_3 = arith.constant 0 : index
    %c0_4 = arith.constant 0 : index
    %2 = vector.load %arg2[%c0_3, %c0_4] : memref<32x32xbf16, #tpu.memory_space<vmem>>, vector<32x32xbf16>
    %c0_5 = arith.constant 0 : index
    %c0_6 = arith.constant 0 : index
    %3 = vector.load %arg3[%c0_5, %c0_6] : memref<32x8xf32, #tpu.memory_space<vmem>>, vector<32x8xf32>
    "tpu.trace_start"() <{level = 10 : i32, message = "rd,cd->rc"}> : () -> ()
    %cst = arith.constant dense<0.000000e+00> : vector<32x32xf32>
    %4 = tpu.matmul %0, %1, %cst {dimension_numbers = #tpu.dot_dimension_numbers<[1], [1], [0], [0], [0, 0, 1, 0], [], []>} : vector<32x32xbf16>, vector<32x32xbf16>, vector<32x32xf32> -> vector<32x32xf32>
    "tpu.trace_stop"() : () -> ()
    %cst_7 = arith.constant 0.176776692 : f32
    %5 = vector.broadcast %cst_7 : f32 to vector<32x32xf32>
    %6 = arith.mulf %4, %5 : vector<32x32xf32>
    %7 = tpu.iota {dimensions = array<i32: 0>} : vector<32x32xi32>
    %8 = tpu.iota {dimensions = array<i32: 1>} : vector<32x32xi32>
    %9 = tpu.iota {dimensions = array<i32: 0>} : vector<8x32xi32>
    %10 = tpu.iota {dimensions = array<i32: 1>} : vector<8x32xi32>
    %false = arith.constant false
    %11 = vector.broadcast %false : i1 to vector<32x32xi1>
    %cst_8 = arith.constant 0.000000e+00 : f32
    %12 = vector.broadcast %cst_8 : f32 to vector<8x32xf32>
    %c0_i32 = arith.constant 0 : i32
    %13 = vector.broadcast %c0_i32 : i32 to vector<32x32xi32>
    %14 = arith.cmpi sge, %7, %13 : vector<32x32xi32>
    %c8_i32 = arith.constant 8 : i32
    %15 = vector.broadcast %c8_i32 : i32 to vector<32x32xi32>
    %16 = arith.cmpi slt, %7, %15 : vector<32x32xi32>
    %17 = arith.andi %14, %16 : vector<32x32xi1>
    %c0_i32_9 = arith.constant 0 : i32
    %18 = vector.broadcast %c0_i32_9 : i32 to vector<32x32xi32>
    %19 = arith.cmpi sge, %8, %18 : vector<32x32xi32>
    %20 = arith.andi %17, %19 : vector<32x32xi1>
    %c8_i32_10 = arith.constant 8 : i32
    %21 = vector.broadcast %c8_i32_10 : i32 to vector<32x32xi32>
    %22 = arith.cmpi slt, %8, %21 : vector<32x32xi32>
    %23 = arith.andi %20, %22 : vector<32x32xi1>
    %24 = arith.ori %11, %23 : vector<32x32xi1>
    %c0_i32_11 = arith.constant 0 : i32
    %25 = vector.broadcast %c0_i32_11 : i32 to vector<8x32xi32>
    %26 = arith.addi %9, %25 : vector<8x32xi32>
    %27 = arith.cmpi eq, %10, %26 : vector<8x32xi32>
    %28 = arith.extui %27 : vector<8x32xi1> to vector<8x32xi32>
    %29 = arith.sitofp %28 : vector<8x32xi32> to vector<8x32xf32>
    %30 = arith.addf %12, %29 : vector<8x32xf32>
    %c8_i32_12 = arith.constant 8 : i32
    %31 = vector.broadcast %c8_i32_12 : i32 to vector<32x32xi32>
    %32 = arith.cmpi sge, %7, %31 : vector<32x32xi32>
    %c16_i32 = arith.constant 16 : i32
    %33 = vector.broadcast %c16_i32 : i32 to vector<32x32xi32>
    %34 = arith.cmpi slt, %7, %33 : vector<32x32xi32>
    %35 = arith.andi %32, %34 : vector<32x32xi1>
    %c8_i32_13 = arith.constant 8 : i32
    %36 = vector.broadcast %c8_i32_13 : i32 to vector<32x32xi32>
    %37 = arith.cmpi sge, %8, %36 : vector<32x32xi32>
    %38 = arith.andi %35, %37 : vector<32x32xi1>
    %c16_i32_14 = arith.constant 16 : i32
    %39 = vector.broadcast %c16_i32_14 : i32 to vector<32x32xi32>
    %40 = arith.cmpi slt, %8, %39 : vector<32x32xi32>
    %41 = arith.andi %38, %40 : vector<32x32xi1>
    %42 = arith.ori %24, %41 : vector<32x32xi1>
    %c8_i32_15 = arith.constant 8 : i32
    %43 = vector.broadcast %c8_i32_15 : i32 to vector<8x32xi32>
    %44 = arith.addi %9, %43 : vector<8x32xi32>
    %45 = arith.cmpi eq, %10, %44 : vector<8x32xi32>
    %46 = arith.extui %45 : vector<8x32xi1> to vector<8x32xi32>
    %47 = arith.sitofp %46 : vector<8x32xi32> to vector<8x32xf32>
    %48 = arith.addf %30, %47 : vector<8x32xf32>
    %c16_i32_16 = arith.constant 16 : i32
    %49 = vector.broadcast %c16_i32_16 : i32 to vector<32x32xi32>
    %50 = arith.cmpi sge, %7, %49 : vector<32x32xi32>
    %c24_i32 = arith.constant 24 : i32
    %51 = vector.broadcast %c24_i32 : i32 to vector<32x32xi32>
    %52 = arith.cmpi slt, %7, %51 : vector<32x32xi32>
    %53 = arith.andi %50, %52 : vector<32x32xi1>
    %c16_i32_17 = arith.constant 16 : i32
    %54 = vector.broadcast %c16_i32_17 : i32 to vector<32x32xi32>
    %55 = arith.cmpi sge, %8, %54 : vector<32x32xi32>
    %56 = arith.andi %53, %55 : vector<32x32xi1>
    %c24_i32_18 = arith.constant 24 : i32
    %57 = vector.broadcast %c24_i32_18 : i32 to vector<32x32xi32>
    %58 = arith.cmpi slt, %8, %57 : vector<32x32xi32>
    %59 = arith.andi %56, %58 : vector<32x32xi1>
    %60 = arith.ori %42, %59 : vector<32x32xi1>
    %c16_i32_19 = arith.constant 16 : i32
    %61 = vector.broadcast %c16_i32_19 : i32 to vector<8x32xi32>
    %62 = arith.addi %9, %61 : vector<8x32xi32>
    %63 = arith.cmpi eq, %10, %62 : vector<8x32xi32>
    %64 = arith.extui %63 : vector<8x32xi1> to vector<8x32xi32>
    %65 = arith.sitofp %64 : vector<8x32xi32> to vector<8x32xf32>
    %66 = arith.addf %48, %65 : vector<8x32xf32>
    %c24_i32_20 = arith.constant 24 : i32
    %67 = vector.broadcast %c24_i32_20 : i32 to vector<32x32xi32>
    %68 = arith.cmpi sge, %7, %67 : vector<32x32xi32>
    %c32_i32 = arith.constant 32 : i32
    %69 = vector.broadcast %c32_i32 : i32 to vector<32x32xi32>
    %70 = arith.cmpi slt, %7, %69 : vector<32x32xi32>
    %71 = arith.andi %68, %70 : vector<32x32xi1>
    %c24_i32_21 = arith.constant 24 : i32
    %72 = vector.broadcast %c24_i32_21 : i32 to vector<32x32xi32>
    %73 = arith.cmpi sge, %8, %72 : vector<32x32xi32>
    %74 = arith.andi %71, %73 : vector<32x32xi1>
    %c32_i32_22 = arith.constant 32 : i32
    %75 = vector.broadcast %c32_i32_22 : i32 to vector<32x32xi32>
    %76 = arith.cmpi slt, %8, %75 : vector<32x32xi32>
    %77 = arith.andi %74, %76 : vector<32x32xi1>
    %78 = arith.ori %60, %77 : vector<32x32xi1>
    %c24_i32_23 = arith.constant 24 : i32
    %79 = vector.broadcast %c24_i32_23 : i32 to vector<8x32xi32>
    %80 = arith.addi %9, %79 : vector<8x32xi32>
    %81 = arith.cmpi eq, %10, %80 : vector<8x32xi32>
    %82 = arith.extui %81 : vector<8x32xi1> to vector<8x32xi32>
    %83 = arith.sitofp %82 : vector<8x32xi32> to vector<8x32xf32>
    %84 = arith.addf %66, %83 : vector<8x32xf32>
    %cst_24 = arith.constant 0.000000e+00 : f32
    %cst_25 = arith.constant -1.000000e+30 : f32
    %85 = vector.broadcast %cst_24 : f32 to vector<32x32xf32>
    %86 = vector.broadcast %cst_25 : f32 to vector<32x32xf32>
    %87 = arith.select %78, %85, %86 : vector<32x32xi1>, vector<32x32xf32>
    "tpu.trace_start"() <{level = 10 : i32, message = "rj,jc->rc"}> : () -> ()
    %cst_26 = arith.constant dense<0.000000e+00> : vector<32x32xf32>
    %88 = tpu.matmul %3, %84, %cst_26 {dimension_numbers = #tpu.dot_dimension_numbers<[1], [0], [0], [1], [0, 0, 1, 1], [], []>} : vector<32x8xf32>, vector<8x32xf32>, vector<32x32xf32> -> vector<32x32xf32>
    "tpu.trace_stop"() : () -> ()
    %89 = arith.addf %6, %87 : vector<32x32xf32>
    %90 = arith.addf %89, %88 : vector<32x32xf32>
    %cst_27 = arith.constant dense<0xFF800000> : vector<32xf32>
    %91 = vector.multi_reduction <maximumf>, %90, %cst_27 [1] : vector<32x32xf32> to vector<32xf32>
    %92 = vector.shape_cast %91 : vector<32xf32> to vector<32x1xf32>
    %93 = vector.broadcast %92 : vector<32x1xf32> to vector<32x32xf32>
    %94 = arith.subf %90, %93 : vector<32x32xf32>
    %95 = math.exp %94 : vector<32x32xf32>
    %cst_28 = arith.constant dense<0.000000e+00> : vector<32xf32>
    %96 = vector.multi_reduction <add>, %95, %cst_28 [1] : vector<32x32xf32> to vector<32xf32>
    %97 = vector.shape_cast %96 : vector<32xf32> to vector<32x1xf32>
    %98 = vector.broadcast %97 : vector<32x1xf32> to vector<32x32xf32>
    %99 = arith.divf %95, %98 : vector<32x32xf32>
    %c0_29 = arith.constant 0 : index
    %c0_30 = arith.constant 0 : index
    %100 = vector.load %arg5[%c0_29, %c0_30] : memref<32x32xf32, #tpu.memory_space<vmem>>, vector<32x32xf32>
    tpu.vector_store %arg5[%c0_29, %c0_30], %99 {strides = array<i32>} : memref<32x32xf32, #tpu.memory_space<vmem>>, vector<32x32xf32>,
    %101 = arith.truncf %99 : vector<32x32xf32> to vector<32x32xbf16>
    "tpu.trace_start"() <{level = 10 : i32, message = "rc,cd->rd"}> : () -> ()
    %cst_31 = arith.constant dense<0.000000e+00> : vector<32x32xf32>
    %102 = tpu.matmul %101, %2, %cst_31 {dimension_numbers = #tpu.dot_dimension_numbers<[1], [0], [0], [1], [0, 0, 1, 1], [], []>} : vector<32x32xbf16>, vector<32x32xbf16>, vector<32x32xf32> -> vector<32x32xf32>
    "tpu.trace_stop"() : () -> ()
    %c0_32 = arith.constant 0 : index
    %c0_33 = arith.constant 0 : index
    %103 = vector.load %arg4[%c0_32, %c0_33] : memref<32x32xf32, #tpu.memory_space<vmem>>, vector<32x32xf32>
    tpu.vector_store %arg4[%c0_32, %c0_33], %102 {strides = array<i32>} : memref<32x32xf32, #tpu.memory_space<vmem>>, vector<32x32xf32>,
    return
  }
}

</mosaic_0001>

<llo_original>
// kernel: tpu_custom_call.1
$region0: #{tpu_custom_call.1}
  #allocation0 [shape = 'u32[]', space=smem, size = 0x4, offset = 0x4, fixed_abs, tag = 'smem constant byte address 0x4 - core index']
  #allocation1 [shape = 'u32[144,128]{1,0:T(1,128)}', space=vmem, size = 0x12000, scoped, tag = 'internal scratch']
  %s0 = inlined_call_operand.vmem [shape: bf16[32,32], index: 0, kind: input, shape index: {}]
  %s1 = inlined_call_operand.vmem [shape: bf16[32,32], index: 1, kind: input, shape index: {}]
  %s2 = inlined_call_operand.hbm [shape: bf16[32,32], index: 2, kind: input, shape index: {}]
  %s3 = inlined_call_operand.vmem [shape: f32[32,8], index: 3, kind: input, shape index: {}]
  %s4 = inlined_call_operand.hbm [shape: f32[32,32], index: 4, kind: output, shape index: {0}]
  %s5 = inlined_call_operand.hbm [shape: f32[32,32], index: 5, kind: output, shape index: {1}]
  %6 = xla_tuple %s4, %s5
  %s7 = sld [smem:[#allocation0]]
  $region38: #{tpu_custom_call.1} parent=0
    _
  %s9 = ssub.s32 1, %s7
  %s10 = scalar_select 0, %s9, %s7
  $region1: #{tpu_custom_call.1} parent=0
    #allocation2 [shape = 'u8[8192]{0}', space=vmem, size = 0x2000, scoped, tag = 'input window, operand 2, single buffered']
    #allocation3 [shape = 's32[1]{0}', space=sflag, size = 0x4, scoped, tag = 'scoped memory for tpu_custom_call.1']
    #allocation4 [shape = 's32[1]{0}', space=sflag, size = 0x4, scoped, tag = 'scoped memory for tpu_custom_call.1']
    #allocation5 [shape = 'u8[16384]{0}', space=vmem, size = 0x4000, scoped, tag = 'output window, operand 0, single buffered']
    #allocation6 [shape = 'u8[16384]{0}', space=vmem, size = 0x4000, scoped, tag = 'output window, operand 1, single buffered']
    #allocation7 [shape = 's32[1]{0}', space=sflag, size = 0x4, scoped, tag = 'scoped memory for tpu_custom_call.1']
    %11 = vsyncpa [#allocation3], 0
    %12 = vsyncpa [#allocation4], 0
    %13 = vsyncpa [#allocation7], 0
    // Predicated region
    $region2: #{tpu_custom_call.1} parent=1 // pred_check
      _
    $region3: #{tpu_custom_call.1} parent=1 // pred_check_branch
      %15 = sbr.rel (0) target = $region5
    $region4: #{tpu_custom_call.1} parent=1 // pred_region
      _
    $region5: #{tpu_custom_call.1} parent=1 // pred_fallthru
      _
    // Predicated region
    $region6: #{tpu_custom_call.1} parent=1 // pred_check
      _
    $region7: #{tpu_custom_call.1} parent=1 // pred_check_branch
      %17 = sbr.rel (0) target = $region9
    $region8: #{tpu_custom_call.1} parent=1 // pred_region
      _
    $region9: #{tpu_custom_call.1} parent=1 // pred_fallthru
      _
    // Predicated region
    $region10: #{tpu_custom_call.1} parent=1 // pred_check
      _
    $region11: #{tpu_custom_call.1} parent=1 // pred_check_branch
      %19 = sbr.rel (0) target = $region13
    $region12: #{tpu_custom_call.1} parent=1 // pred_region
      %s21 = ssub.s32 256, 256
      %22 = vsyncadd [#allocation3], %s21
      %s23 = sshll.u32 [#allocation2], 4
      %s24 = int_to_ptr.vmem [resolvable:$true] %s23
      %29 = dma.hbm_to_vmem [thread:$0]  %s2, 256, %s24, [#allocation3], 64, 64, 4
    $region13: #{tpu_custom_call.1} parent=1 // pred_fallthru
      _
    // Predicated region
    $region14: #{tpu_custom_call.1} parent=1 // pred_check
      _
    $region15: #{tpu_custom_call.1} parent=1 // pred_check_branch
      %31 = sbr.rel (0) target = $region17
    $region16: #{tpu_custom_call.1} parent=1 // pred_region
      _
    $region17: #{tpu_custom_call.1} parent=1 // pred_fallthru
      _
    // Predicated region
    $region18: #{tpu_custom_call.1} parent=1 // pred_check
      _
    $region19: #{tpu_custom_call.1} parent=1 // pred_check_branch
      %33 = sbr.rel (0) target = $region21
    $region20: #{tpu_custom_call.1} parent=1 // pred_region
      %34 = dma.done [#allocation3], 256
    $region21: #{tpu_custom_call.1} parent=1 // pred_fallthru
      _
    %v36 = vld [vmem:[%s0] sm:$0xf]
    %v37 = vld [vmem:[%s0 + $0x4] sm:$0xf]
    %v38 = vld [vmem:[%s0 + $0x8] sm:$0xf]
    %v39 = vld [vmem:[%s0 + $0xc] sm:$0xf]
    %v40 = vld [vmem:[%s1] sm:$0xf]
    %v41 = vld [vmem:[%s1 + $0x4] sm:$0xf]
    %v42 = vld [vmem:[%s1 + $0x8] sm:$0xf]
    %v43 = vld [vmem:[%s1 + $0xc] sm:$0xf]
    %v44 = vld [vmem:[#allocation2] sm:$0xf]
    %v45 = vld [vmem:[#allocation2 + $0x4] sm:$0xf]
    %v46 = vld [vmem:[#allocation2 + $0x8] sm:$0xf]
    %v47 = vld [vmem:[#allocation2 + $0xc] sm:$0xf]
    %v48 = vld [vmem:[%s3] sm:$0xff]
    %v49 = vld [vmem:[%s3 + $0x8] sm:$0xff]
    %v50 = vld [vmem:[%s3 + $0x10] sm:$0xff]
    %v51 = vld [vmem:[%s3 + $0x18] sm:$0xff]
    %v56 = vunpack.c.l.b16 %v36
    %v57 = vunpack.c.l.b16 %v37
    %v58 = vunpack.c.l.b16 %v38
    %v59 = vunpack.c.l.b16 %v39
    %v60 = vpack.c.b16 %v57, %v56
    %v61 = vpack.c.b16 %v59, %v58
    %v66 = vunpack.c.l.b16 %v40
    %v67 = vunpack.c.l.b16 %v41
    %v68 = vunpack.c.l.b16 %v42
    %v69 = vunpack.c.l.b16 %v43
    %v70 = vpack.c.b16 %v67, %v66
    %v71 = vpack.c.b16 %v69, %v68
    %vm72 = vcmask 261120
    %v74 = vsel %vm72, %v60, 0
    %v77 = vsel %vm72, %v61, 0
    %v80 = vsel %vm72, %v70, 0
    %v83 = vsel %vm72, %v71, 0
    %85 = vmatprep.subr.bf16.mxu0 0
    %86 = vmatpush1.bf16.xpose.msra.mxu0 %v80
    %87 = vmatprep.subr.bf16.mxu0 0
    %88 = vmatpush1.bf16.xpose.msra.mxu0 %v83
    %89 = vmatprep.subr.bf16.mxu0 0
    %90 = vmatpush1.bf16.xpose.msra.mxu0 0
    %91 = vmatprep.subr.bf16.mxu0 0
    %92 = vmatpush1.bf16.xpose.msra.mxu0 0
    %93 = vmatprep.subr.bf16.mxu0 0
    %94 = vmatpush1.bf16.xpose.msra.mxu0 0
    %95 = vmatprep.subr.bf16.mxu0 0
    %96 = vmatpush1.bf16.xpose.msra.mxu0 0
    %97 = vmatprep.subr.bf16.mxu0 0
    %98 = vmatpush1.bf16.xpose.msra.mxu0 0
    %99 = vmatprep.subr.bf16.mxu0 0
    %100 = vmatpush1.bf16.xpose.msra.mxu0 0
    %101 = vmatprep.subr.bf16.mxu0 0
    %102 = vmatpush1.bf16.xpose.msra.mxu0 0
    %103 = vmatprep.subr.bf16.mxu0 0
    %104 = vmatpush1.bf16.xpose.msra.mxu0 0
    %105 = vmatprep.subr.bf16.mxu0 0
    %106 = vmatpush1.bf16.xpose.msra.mxu0 0
    %107 = vmatprep.subr.bf16.mxu0 0
    %108 = vmatpush1.bf16.xpose.msra.mxu0 0
    %109 = vmatprep.subr.bf16.mxu0 0
    %110 = vmatpush1.bf16.xpose.msra.mxu0 0
    %111 = vmatprep.subr.bf16.mxu0 0
    %112 = vmatpush1.bf16.xpose.msra.mxu0 0
    %113 = vmatprep.subr.bf16.mxu0 0
    %114 = vmatpush1.bf16.xpose.msra.mxu0 0
    %115 = vmatprep.subr.bf16.mxu0 0
    %116 = vmatpush1.bf16.xpose.msra.mxu0 0
    %117 = vmatprep.mubr.bf16.mxu0 0
    %118 = vmatmul.mubr.bf16.gmra.mrb[0].mxu0 %v74
    %v119 = vpop.f32.mrb[0].mxu0
    %v120 = vadd.f32 0.0, %v119
    %v121 = vpop.f32.mrb[0].mxu0
    %v122 = vpop.f32.mrb[0].mxu0
    %v123 = vadd.f32 0.0, %v122
    %v124 = vpop.f32.mrb[0].mxu0
    %125 = vmatprep.mubr.bf16.mxu0 0
    %126 = vmatmul.mubr.bf16.gmra.mrb[0].mxu0 %v77
    %v127 = vpop.f32.mrb[0].mxu0
    %v128 = vadd.f32 0.0, %v127
    %v129 = vpop.f32.mrb[0].mxu0
    %v130 = vpop.f32.mrb[0].mxu0
    %v131 = vadd.f32 0.0, %v130
    %v132 = vpop.f32.mrb[0].mxu0
    %133 = vdwg.mxu0
    %v134 = vmul.f32 %v120, 0.17677669
    %v135 = vmul.f32 %v123, 0.17677669
    %v136 = vmul.f32 %v128, 0.17677669
    %v137 = vmul.f32 %v131, 0.17677669
    %v138 = vlaneseq
    %v139 = vshrl.u32 %v138, 7
    %v140 = vadd.s32 %v139, 8
    %v141 = vadd.s32 %v139, 16
    %v142 = vadd.s32 %v139, 24
    %v143 = vlaneseq
    %v144 = vand.u32 %v143, 127
    %vm145 = vcmp.ge.s32.totalorder %v139, 0
    %vm146 = vcmp.ge.s32.totalorder %v140, 0
    %vm147 = vcmp.ge.s32.totalorder %v141, 0
    %vm148 = vcmp.ge.s32.totalorder %v142, 0
    %vm149 = vcmp.lt.s32.totalorder %v139, 8
    %vm150 = vcmp.lt.s32.totalorder %v140, 8
    %vm151 = vcmp.lt.s32.totalorder %v141, 8
    %vm152 = vcmp.lt.s32.totalorder %v142, 8
    %vm153 = vmand %vm145, %vm149
    %vm154 = vmand %vm146, %vm150
    %vm155 = vmand %vm147, %vm151
    %vm156 = vmand %vm148, %vm152
    %vm157 = vcmp.ge.s32.totalorder %v144, 0
    %vm158 = vmand %vm153, %vm157
    %vm159 = vmand %vm154, %vm157
    %vm160 = vmand %vm155, %vm157
    %vm161 = vmand %vm156, %vm157
    %vm162 = vcmp.lt.s32.totalorder %v144, 8
    %vm163 = vmand %vm158, %vm162
    %vm164 = vmand %vm159, %vm162
    %vm165 = vmand %vm160, %vm162
    %vm166 = vmand %vm161, %vm162
    %vm167 = vcmp.eq.s32.totalorder %v144, %v139
    %v168 = vsel %vm167, 1, 0
    %v169 = vcvt.s32.f32 %v168
    %v170 = vadd.f32 %v169, 0.0
    %vm171 = vcmp.ge.s32.totalorder %v139, 8
    %vm172 = vcmp.ge.s32.totalorder %v140, 8
    %vm173 = vcmp.ge.s32.totalorder %v141, 8
    %vm174 = vcmp.ge.s32.totalorder %v142, 8
    %vm175 = vcmp.lt.s32.totalorder %v139, 16
    %vm176 = vcmp.lt.s32.totalorder %v140, 16
    %vm177 = vcmp.lt.s32.totalorder %v141, 16
    %vm178 = vcmp.lt.s32.totalorder %v142, 16
    %vm179 = vmand %vm171, %vm175
    %vm180 = vmand %vm172, %vm176
    %vm181 = vmand %vm173, %vm177
    %vm182 = vmand %vm174, %vm178
    %vm183 = vcmp.ge.s32.totalorder %v144, 8
    %vm184 = vmand %vm179, %vm183
    %vm185 = vmand %vm180, %vm183
    %vm186 = vmand %vm181, %vm183
    %vm187 = vmand %vm182, %vm183
    %vm188 = vcmp.lt.s32.totalorder %v144, 16
    %vm189 = vmand %vm184, %vm188
    %vm190 = vmand %vm185, %vm188
    %vm191 = vmand %vm186, %vm188
    %vm192 = vmand %vm187, %vm188
    %vm193 = vmor %vm163, %vm189
    %vm194 = vmor %vm164, %vm190
    %vm195 = vmor %vm165, %vm191
    %vm196 = vmor %vm166, %vm192
    %vm197 = vcmp.eq.s32.totalorder %v144, %v140
    %v198 = vsel %vm197, 1, 0
    %v199 = vcvt.s32.f32 %v198
    %v200 = vadd.f32 %v170, %v199
    %vm201 = vcmp.ge.s32.totalorder %v139, 16
    %vm202 = vcmp.ge.s32.totalorder %v140, 16
    %vm203 = vcmp.ge.s32.totalorder %v141, 16
    %vm204 = vcmp.ge.s32.totalorder %v142, 16
    %vm205 = vcmp.lt.s32.totalorder %v139, 24
    %vm206 = vcmp.lt.s32.totalorder %v140, 24
    %vm207 = vcmp.lt.s32.totalorder %v141, 24
    %vm208 = vcmp.lt.s32.totalorder %v142, 24
    %vm209 = vmand %vm201, %vm205
    %vm210 = vmand %vm202, %vm206
    %vm211 = vmand %vm203, %vm207
    %vm212 = vmand %vm204, %vm208
    %vm213 = vcmp.ge.s32.totalorder %v144, 16
    %vm214 = vmand %vm209, %vm213
    %vm215 = vmand %vm210, %vm213
    %vm216 = vmand %vm211, %vm213
    %vm217 = vmand %vm212, %vm213
    %vm218 = vcmp.lt.s32.totalorder %v144, 24
    %vm219 = vmand %vm214, %vm218
    %vm220 = vmand %vm215, %vm218
    %vm221 = vmand %vm216, %vm218
    %vm222 = vmand %vm217, %vm218
    %vm223 = vmor %vm193, %vm219
    %vm224 = vmor %vm194, %vm220
    %vm225 = vmor %vm195, %vm221
    %vm226 = vmor %vm196, %vm222
    %vm227 = vcmp.eq.s32.totalorder %v144, %v141
    %v228 = vsel %vm227, 1, 0
    %v229 = vcvt.s32.f32 %v228
    %v230 = vadd.f32 %v200, %v229
    %vm231 = vcmp.ge.s32.totalorder %v139, 24
    %vm232 = vcmp.ge.s32.totalorder %v140, 24
    %vm233 = vcmp.ge.s32.totalorder %v141, 24
    %vm234 = vcmp.ge.s32.totalorder %v142, 24
    %vm235 = vcmp.lt.s32.totalorder %v139, 32
    %vm236 = vcmp.lt.s32.totalorder %v140, 32
    %vm237 = vcmp.lt.s32.totalorder %v141, 32
    %vm238 = vcmp.lt.s32.totalorder %v142, 32
    %vm239 = vmand %vm231, %vm235
    %vm240 = vmand %vm232, %vm236
    %vm241 = vmand %vm233, %vm237
    %vm242 = vmand %vm234, %vm238
    %vm243 = vcmp.ge.s32.totalorder %v144, 24
    %vm244 = vmand %vm239, %vm243
    %vm245 = vmand %vm240, %vm243
    %vm246 = vmand %vm241, %vm243
    %vm247 = vmand %vm242, %vm243
    %vm248 = vcmp.lt.s32.totalorder %v144, 32
    %vm249 = vmand %vm244, %vm248
    %vm250 = vmand %vm245, %vm248
    %vm251 = vmand %vm246, %vm248
    %vm252 = vmand %vm247, %vm248
    %vm253 = vmor %vm223, %vm249
    %vm254 = vmor %vm224, %vm250
    %vm255 = vmor %vm225, %vm251
    %vm256 = vmor %vm226, %vm252
    %vm257 = vcmp.eq.s32.totalorder %v144, %v142
    %v258 = vsel %vm257, 1, 0
    %v259 = vcvt.s32.f32 %v258
    %v260 = vadd.f32 %v230, %v259
    %v261 = vsel %vm253, 0.0, -1e+30
    %v262 = vsel %vm254, 0.0, -1e+30
    %v263 = vsel %vm255, 0.0, -1e+30
    %v264 = vsel %vm256, 0.0, -1e+30
    %vm265 = vcmask 64512
    %v267 = vsel %vm265, %v48, 0
    %v270 = vsel %vm265, %v49, 0
    %v273 = vsel %vm265, %v50, 0
    %v276 = vsel %vm265, %v51, 0
    %278 = vmatprep.subr.mxu0 0.0
    %279 = vmatpush1.msra.mxu0 %v260
    %280 = vmatprep.subr.mxu0 0.0
    %281 = vmatpush1.msra.mxu0 0.0
    %282 = vmatprep.subr.mxu0 0.0
    %283 = vmatpush1.msra.mxu0 0.0
    %284 = vmatprep.subr.mxu0 0.0
    %285 = vmatpush1.msra.mxu0 0.0
    %286 = vmatprep.subr.mxu0 0.0
    %287 = vmatpush1.msra.mxu0 0.0
    %288 = vmatprep.subr.mxu0 0.0
    %289 = vmatpush1.msra.mxu0 0.0
    %290 = vmatprep.subr.mxu0 0.0
    %291 = vmatpush1.msra.mxu0 0.0
    %292 = vmatprep.subr.mxu0 0.0
    %293 = vmatpush1.msra.mxu0 0.0
    %294 = vmatprep.subr.mxu0 0.0
    %295 = vmatpush1.msra.mxu0 0.0
    %296 = vmatprep.subr.mxu0 0.0
    %297 = vmatpush1.msra.mxu0 0.0
    %298 = vmatprep.subr.mxu0 0.0
    %299 = vmatpush1.msra.mxu0 0.0
    %300 = vmatprep.subr.mxu0 0.0
    %301 = vmatpush1.msra.mxu0 0.0
    %302 = vmatprep.subr.mxu0 0.0
    %303 = vmatpush1.msra.mxu0 0.0
    %304 = vmatprep.subr.mxu0 0.0
    %305 = vmatpush1.msra.mxu0 0.0
    %306 = vmatprep.subr.mxu0 0.0
    %307 = vmatpush1.msra.mxu0 0.0
    %308 = vmatprep.subr.mxu0 0.0
    %309 = vmatpush1.msra.mxu0 0.0
    %310 = vmatprep.subr.mxu0 0.0
    %311 = vmatpush1.msra.mxu0 0.0
    %312 = vmatprep.subr.mxu0 0.0
    %313 = vmatpush1.msra.mxu0 0.0
    %314 = vmatprep.subr.mxu0 0.0
    %315 = vmatpush1.msra.mxu0 0.0
    %316 = vmatprep.subr.mxu0 0.0
    %317 = vmatpush1.msra.mxu0 0.0
    %318 = vmatprep.subr.mxu0 0.0
    %319 = vmatpush1.msra.mxu0 0.0
    %320 = vmatprep.subr.mxu0 0.0
    %321 = vmatpush1.msra.mxu0 0.0
    %322 = vmatprep.subr.mxu0 0.0
    %323 = vmatpush1.msra.mxu0 0.0
    %324 = vmatprep.subr.mxu0 0.0
    %325 = vmatpush1.msra.mxu0 0.0
    %326 = vmatprep.subr.mxu0 0.0
    %327 = vmatpush1.msra.mxu0 0.0
    %328 = vmatprep.subr.mxu0 0.0
    %329 = vmatpush1.msra.mxu0 0.0
    %330 = vmatprep.subr.mxu0 0.0
    %331 = vmatpush1.msra.mxu0 0.0
    %332 = vmatprep.subr.mxu0 0.0
    %333 = vmatpush1.msra.mxu0 0.0
    %334 = vmatprep.subr.mxu0 0.0
    %335 = vmatpush1.msra.mxu0 0.0
    %336 = vmatprep.subr.mxu0 0.0
    %337 = vmatpush1.msra.mxu0 0.0
    %338 = vmatprep.subr.mxu0 0.0
    %339 = vmatpush1.msra.mxu0 0.0
    %340 = vmatprep.subr.mxu0 0.0
    %341 = vmatpush1.msra.mxu0 0.0
    %342 = vmatprep.mubr.f32.mxu0 0.0
    %343 = vmatmul.mubr.f32.gmra.mrb[0].mxu0 %v267
    %v344 = vpop.f32.mrb[0].mxu0
    %v345 = vadd.f32 0.0, %v344
    %v346 = vpop.f32.mrb[0].mxu0
    %347 = vmatprep.mubr.f32.mxu0 0.0
    %348 = vmatmul.mubr.f32.gmra.mrb[0].mxu0 %v270
    %v349 = vpop.f32.mrb[0].mxu0
    %v350 = vadd.f32 0.0, %v349
    %v351 = vpop.f32.mrb[0].mxu0
    %352 = vmatprep.mubr.f32.mxu0 0.0
    %353 = vmatmul.mubr.f32.gmra.mrb[0].mxu0 %v273
    %v354 = vpop.f32.mrb[0].mxu0
    %v355 = vadd.f32 0.0, %v354
    %v356 = vpop.f32.mrb[0].mxu0
    %357 = vmatprep.mubr.f32.mxu0 0.0
    %358 = vmatmul.mubr.f32.gmra.mrb[0].mxu0 %v276
    %v359 = vpop.f32.mrb[0].mxu0
    %v360 = vadd.f32 0.0, %v359
    %v361 = vpop.f32.mrb[0].mxu0
    %362 = vdwg.mxu0
    %v363 = vadd.f32 %v134, %v261
    %v364 = vadd.f32 %v135, %v262
    %v365 = vadd.f32 %v136, %v263
    %v366 = vadd.f32 %v137, %v264
    %v367 = vadd.f32 %v363, %v345
    %v368 = vadd.f32 %v364, %v350
    %v369 = vadd.f32 %v365, %v355
    %v370 = vadd.f32 %v366, %v360
    %v371 = vsel %vm72, %v367, -inf
    %372 = vmax.xlane.f32.xlu0 %v371
    %v373 = vpop.xlane.xlu0 %372
    %v374 = vsel %vm72, %v368, -inf
    %375 = vmax.xlane.f32.xlu0 %v374
    %v376 = vpop.xlane.xlu0 %375
    %v377 = vsel %vm72, %v369, -inf
    %378 = vmax.xlane.f32.xlu0 %v377
    %v379 = vpop.xlane.xlu0 %378
    %v380 = vsel %vm72, %v370, -inf
    %381 = vmax.xlane.f32.xlu0 %v380
    %v382 = vpop.xlane.xlu0 %381
    %v383 = vsub.f32 %v367, %v373
    %v384 = vsub.f32 %v368, %v376
    %v385 = vsub.f32 %v369, %v379
    %v386 = vsub.f32 %v370, %v382
    %v387 = vmul.f32 %v383, 1.442695
    %v388 = vpow.pop %v387
    %v389 = vmul.f32 %v384, 1.442695
    %v390 = vpow.pop %v389
    %v391 = vmul.f32 %v385, 1.442695
    %v392 = vpow.pop %v391
    %v393 = vmul.f32 %v386, 1.442695
    %v394 = vpow.pop %v393
    %v395 = vsel %vm72, %v388, 0.0
    %396 = vadd.xlane.f32.xlu0 %v395
    %v397 = vpop.xlane.xlu0 %396
    %v398 = vsel %vm72, %v390, 0.0
    %399 = vadd.xlane.f32.xlu0 %v398
    %v400 = vpop.xlane.xlu0 %399
    %v401 = vsel %vm72, %v392, 0.0
    %402 = vadd.xlane.f32.xlu0 %v401
    %v403 = vpop.xlane.xlu0 %402
    %v404 = vsel %vm72, %v394, 0.0
    %405 = vadd.xlane.f32.xlu0 %v404
    %v406 = vpop.xlane.xlu0 %405
    %v407 = vrcp.pop %v397
    %v408 = vmul.f32 %v388, %v407
    %v409 = vrcp.pop %v400
    %v410 = vmul.f32 %v390, %v409
    %v411 = vrcp.pop %v403
    %v412 = vmul.f32 %v392, %v411
    %v413 = vrcp.pop %v406
    %v414 = vmul.f32 %v394, %v413
    %415 = vst.msk [vmem:[#allocation6] sm:$0xff] %vm72, %v408
    %416 = vst.msk [vmem:[#allocation6 + $0x8] sm:$0xff] %vm72, %v410
    %417 = vst.msk [vmem:[#allocation6 + $0x10] sm:$0xff] %vm72, %v412
    %418 = vst.msk [vmem:[#allocation6 + $0x18] sm:$0xff] %vm72, %v414
    %v419 = vpack.c.bf16 %v410, %v408
    %v420 = vpack.c.bf16 %v414, %v412
    %v425 = vunpack.c.l.b16 %v44
    %v426 = vunpack.c.l.b16 %v45
    %v427 = vunpack.c.l.b16 %v46
    %v428 = vunpack.c.l.b16 %v47
    %v429 = vpack.c.b16 %v426, %v425
    %v430 = vpack.c.b16 %v428, %v427
    %v434 = vsel %vm72, %v419, 0
    %v437 = vsel %vm72, %v420, 0
    %439 = vmatprep.subr.bf16.mxu0 0
    %440 = vmatpush1.bf16.msra.mxu0 %v429
    %441 = vmatprep.subr.bf16.mxu0 0
    %442 = vmatpush1.bf16.msra.mxu0 %v430
    %443 = vmatprep.subr.bf16.mxu0 0
    %444 = vmatpush1.bf16.msra.mxu0 0
    %445 = vmatprep.subr.bf16.mxu0 0
    %446 = vmatpush1.bf16.msra.mxu0 0
    %447 = vmatprep.subr.bf16.mxu0 0
    %448 = vmatpush1.bf16.msra.mxu0 0
    %449 = vmatprep.subr.bf16.mxu0 0
    %450 = vmatpush1.bf16.msra.mxu0 0
    %451 = vmatprep.subr.bf16.mxu0 0
    %452 = vmatpush1.bf16.msra.mxu0 0
    %453 = vmatprep.subr.bf16.mxu0 0
    %454 = vmatpush1.bf16.msra.mxu0 0
    %455 = vmatprep.subr.bf16.mxu0 0
    %456 = vmatpush1.bf16.msra.mxu0 0
    %457 = vmatprep.subr.bf16.mxu0 0
    %458 = vmatpush1.bf16.msra.mxu0 0
    %459 = vmatprep.subr.bf16.mxu0 0
    %460 = vmatpush1.bf16.msra.mxu0 0
    %461 = vmatprep.subr.bf16.mxu0 0
    %462 = vmatpush1.bf16.msra.mxu0 0
    %463 = vmatprep.subr.bf16.mxu0 0
    %464 = vmatpush1.bf16.msra.mxu0 0
    %465 = vmatprep.subr.bf16.mxu0 0
    %466 = vmatpush1.bf16.msra.mxu0 0
    %467 = vmatprep.subr.bf16.mxu0 0
    %468 = vmatpush1.bf16.msra.mxu0 0
    %469 = vmatprep.subr.bf16.mxu0 0
    %470 = vmatpush1.bf16.msra.mxu0 0
    %471 = vmatprep.mubr.bf16.mxu0 0
    %472 = vmatmul.mubr.bf16.gmra.mrb[0].mxu0 %v434
    %v473 = vpop.f32.mrb[0].mxu0
    %v474 = vadd.f32 0.0, %v473
    %v475 = vpop.f32.mrb[0].mxu0
    %v476 = vpop.f32.mrb[0].mxu0
    %v477 = vadd.f32 0.0, %v476
    %v478 = vpop.f32.mrb[0].mxu0
    %479 = vmatprep.mubr.bf16.mxu0 0
    %480 = vmatmul.mubr.bf16.gmra.mrb[0].mxu0 %v437
    %v481 = vpop.f32.mrb[0].mxu0
    %v482 = vadd.f32 0.0, %v481
    %v483 = vpop.f32.mrb[0].mxu0
    %v484 = vpop.f32.mrb[0].mxu0
    %v485 = vadd.f32 0.0, %v484
    %v486 = vpop.f32.mrb[0].mxu0
    %487 = vdwg.mxu0
    %488 = vst.msk [vmem:[#allocation5] sm:$0xff] %vm72, %v474
    %489 = vst.msk [vmem:[#allocation5 + $0x8] sm:$0xff] %vm72, %v477
    %490 = vst.msk [vmem:[#allocation5 + $0x10] sm:$0xff] %vm72, %v482
    %491 = vst.msk [vmem:[#allocation5 + $0x18] sm:$0xff] %vm72, %v485
    // Predicated region
    $region22: #{tpu_custom_call.1} parent=1 // pred_check
      _
    $region23: #{tpu_custom_call.1} parent=1 // pred_check_branch
      %493 = sbr.rel (0) target = $region25
    $region24: #{tpu_custom_call.1} parent=1 // pred_region
      %s495 = ssub.s32 512, 512
      %496 = vsyncadd [#allocation4], %s495
      %s497 = sshll.u32 [#allocation5], 4
      %s498 = int_to_ptr.vmem [resolvable:$true] %s497
      %503 = dma.vmem_to_hbm [thread:$0]  %s498, 512, %s4, [#allocation4], 128, 128, 8
    $region25: #{tpu_custom_call.1} parent=1 // pred_fallthru
      _
    // Predicated region
    $region26: #{tpu_custom_call.1} parent=1 // pred_check
      _
    $region27: #{tpu_custom_call.1} parent=1 // pred_check_branch
      %505 = sbr.rel (0) target = $region29
    $region28: #{tpu_custom_call.1} parent=1 // pred_region
      %s507 = ssub.s32 512, 512
      %508 = vsyncadd [#allocation7], %s507
      %s509 = sshll.u32 [#allocation6], 4
      %s510 = int_to_ptr.vmem [resolvable:$true] %s509
      %515 = dma.vmem_to_hbm [thread:$0]  %s510, 512, %s5, [#allocation7], 128, 128, 8
    $region29: #{tpu_custom_call.1} parent=1 // pred_fallthru
      _
    // Predicated region
    $region30: #{tpu_custom_call.1} parent=1 // pred_check
      _
    $region31: #{tpu_custom_call.1} parent=1 // pred_check_branch
      %517 = sbr.rel (0) target = $region33
    $region32: #{tpu_custom_call.1} parent=1 // pred_region
      %518 = dma.done [#allocation4], 512
    $region33: #{tpu_custom_call.1} parent=1 // pred_fallthru
      _
    // Predicated region
    $region34: #{tpu_custom_call.1} parent=1 // pred_check
      _
    $region35: #{tpu_custom_call.1} parent=1 // pred_check_branch
      %520 = sbr.rel (0) target = $region37
    $region36: #{tpu_custom_call.1} parent=1 // pred_region
      %521 = dma.done [#allocation7], 512
    $region37: #{tpu_custom_call.1} parent=1 // pred_fallthru
      _
    %522 = vsyncpa [#allocation3], 1
    %523 = vsyncpa [#allocation4], 1
    %524 = vsyncpa [#allocation7], 1

</llo_original>
